<compile_context>
chip_gen: v7x
topology: tpu7x:2x2x1
jax: 0.10.0
libtpu: 0.0.40
codegen_flags: <defaults>
</compile_context>

<pallas_src>
import functools

import jax
import jax.numpy as jnp
from jax import lax
from jax.experimental import pallas as pl
from jax.experimental.pallas import tpu as pltpu

LANE = 128
SUBLANE = 8


def _round_up(x, m):
    return ((x + m - 1) // m) * m


def _cdiv(a, b):
    return -(-a // b)


def mlp_kernel(x_ref, w1_ref, b1_ref, w2_ref, b2_ref, w3t_ref, b3t_ref, o_ref):
    # fc1 + ReLU: f32 x tile (natural feature width, K=in_size) cast to bf16 in-kernel.
    x = x_ref[...].astype(w1_ref.dtype)
    h1 = jnp.dot(x, w1_ref[...], preferred_element_type=jnp.float32)
    h1 = jnp.maximum(h1 + b1_ref[...], 0.0)
    # fc2 + ReLU
    h2 = jnp.dot(h1.astype(w2_ref.dtype), w2_ref[...],
                 preferred_element_type=jnp.float32)
    h2 = jnp.maximum(h2 + b2_ref[...], 0.0)
    # Output layer computed transposed: (out, hid) . (tb, hid)^T -> (out, tb).
    # Batch lands on the lane axis so the store is lane-dense (unmasked vst) and
    # the HBM writeback is out_size*4 bytes per batch row.
    logits_t = lax.dot_general(
        w3t_ref[...], h2.astype(w3t_ref.dtype),
        dimension_numbers=(((1,), (1,)), ((), ())),
        preferred_element_type=jnp.float32)
    # Sigmoid (exp/recip run on the EUP slot); bias broadcast along lanes.
    o_ref[...] = jax.nn.sigmoid(logits_t + b3t_ref[...])


def prepare_params(w1, b1, w2, b2, w3, b3, compute_dtype=jnp.bfloat16):
    """Pad weights/biases to lane-dense hidden width and cast weights to bf16.

    Weight layout is (in_features, out_features) = PyTorch weight.T.
    The input-feature dim of w1 is NOT padded (x is read at natural width);
    w3 is stored transposed as (out_size, hidden_p) so the kernel can produce a
    batch-on-lanes output tile directly.  Call once and reuse across forwards.
    """
    in_size, hidden = w1.shape
    out_size = w3.shape[1]
    hid_p = _round_up(hidden, LANE)

    def pad2(a, rows, cols, dtype):
        buf = jnp.zeros((rows, cols), dtype)
        return buf.at[: a.shape[0], : a.shape[1]].set(a.astype(dtype))

    w1p = pad2(w1, in_size, hid_p, compute_dtype)            # (in, hid_p)
    b1p = pad2(b1.reshape(1, -1), 1, hid_p, jnp.float32)     # (1, hid_p)
    w2p = pad2(w2, hid_p, hid_p, compute_dtype)              # (hid_p, hid_p)
    b2p = pad2(b2.reshape(1, -1), 1, hid_p, jnp.float32)     # (1, hid_p)
    w3t = pad2(w3.T, out_size, hid_p, compute_dtype)         # (out, hid_p) transposed
    b3t = b3.reshape(-1, 1).astype(jnp.float32)              # (out, 1)
    return (w1p, b1p, w2p, b2p, w3t, b3t), (in_size, out_size)


@functools.partial(jax.jit, static_argnames=("out_size", "block_batch"))
def neural_network_forward(x, padded_params, out_size, block_batch=1024):
    """Forward pass. x: (B, input_size) f32 -> (B, out_size) f32."""
    w1p, b1p, w2p, b2p, w3t, b3t = padded_params
    B, in_size = x.shape
    hid_p = w1p.shape[1]

    # --- batch tiling: balanced tiles, >=2 grid steps whenever B > block_batch ---
    b_pad8 = _round_up(B, SUBLANE)
    n_tiles = _cdiv(b_pad8, block_batch)
    if n_tiles <= 1:
        tb = b_pad8                                    # single step; tb == full batch dim
    else:
        # balance tiles and keep the lane axis of the transposed output 128-dense
        tb = _round_up(_cdiv(b_pad8, n_tiles), LANE)
    b_pad = _round_up(B, tb)
    grid = (b_pad // tb,)

    # Batch-pad only (natural feature width, stays f32; bf16 cast happens in-kernel).
    if b_pad == B:
        xp = x
    else:
        xp = jnp.zeros((b_pad, in_size), x.dtype).at[:B, :].set(x)

    # Weights/biases: same block every grid step -> VMEM-resident, no re-DMA.
    resident = lambda a: pl.BlockSpec(a.shape, lambda i: (0, 0))

    # Scoped-VMEM budget: a handful of (tb, hid_p) f32/bf16 temporaries plus the
    # double-buffered x/out tiles and resident weights.  Cap well below v7x's
    # 64 MiB physical VMEM so the compiler keeps internal-scratch headroom.
    vmem_limit = min(32 << 20, max(16 << 20, 12 * tb * hid_p * 4))

    out_t = pl.pallas_call(
        mlp_kernel,
        out_shape=jax.ShapeDtypeStruct((out_size, b_pad), jnp.float32),
        grid_spec=pltpu.PrefetchScalarGridSpec(
            num_scalar_prefetch=0,
            grid=grid,
            in_specs=[
                pl.BlockSpec((tb, in_size), lambda i: (i, 0)),   # x tile (natural width)
                resident(w1p), resident(b1p),
                resident(w2p), resident(b2p),
                resident(w3t), resident(b3t),
            ],
            # Transposed, lane-dense output: batch on the lane axis.
            out_specs=pl.BlockSpec((out_size, tb), lambda i: (0, i)),
        ),
        compiler_params=pltpu.CompilerParams(
            dimension_semantics=("parallel",),   # shard batch tiles across TCs on v7x
            vmem_limit_bytes=vmem_limit,
        ),
    )(xp, w1p, b1p, w2p, b2p, w3t, b3t)

    # Drop batch padding and return (B, out_size) in PyTorch layout.
    return out_t[:, :B].T


def init_params(key, input_size, hidden_size, output_size):
    """Deterministic PyTorch-style init: U(-1/sqrt(fan_in), 1/sqrt(fan_in))."""
    ks = jax.random.split(key, 6)

    def lin(kw, kb, fan_in, fan_out):
        bound = 1.0 / jnp.sqrt(float(fan_in))
        w = jax.random.uniform(kw, (fan_in, fan_out), jnp.float32, -bound, bound)
        b = jax.random.uniform(kb, (1, fan_out), jnp.float32, -bound, bound)
        return w, b

    w1, b1 = lin(ks[0], ks[1], input_size, hidden_size)
    w2, b2 = lin(ks[2], ks[3], hidden_size, hidden_size)
    w3, b3 = lin(ks[4], ks[5], hidden_size, output_size)
    return w1, b1, w2, b2, w3, b3


def _bf(a):
    return a.astype(jnp.bfloat16).astype(jnp.float32)


def _ref_bf16(x, params):
    w1, b1, w2, b2, w3, b3 = params
    h1 = jnp.maximum(_bf(x) @ _bf(w1) + b1, 0.0)
    h2 = jnp.maximum(_bf(h1) @ _bf(w2) + b2, 0.0)
    return jax.nn.sigmoid(_bf(h2) @ _bf(w3) + b3)


def _ref_f32(x, params):
    w1, b1, w2, b2, w3, b3 = params
    h1 = jnp.maximum(x @ w1 + b1, 0.0)
    h2 = jnp.maximum(h1 @ w2 + b2, 0.0)
    return jax.nn.sigmoid(h2 @ w3 + b3)


if __name__ == "__main__":
    # Water-quality-style shapes: 9 input features, 32 hidden, 1 output.
    input_size, hidden_size, output_size = 9, 32, 1

    key = jax.random.PRNGKey(0)
    k_x, k_x2, k_p = jax.random.split(key, 3)
    params = init_params(k_p, input_size, hidden_size, output_size)
    padded_params, (_, out_size) = prepare_params(*params)

    # --- small batch: single-tile path ---
    x = jax.random.normal(k_x, (8, input_size), jnp.float32)
    out = neural_network_forward(x, padded_params, out_size=out_size)
    out = jax.block_until_ready(out)
    assert out.shape == (8, output_size)
    assert jnp.allclose(out, _ref_bf16(x, params), atol=1e-4, rtol=1e-4), (
        jnp.max(jnp.abs(out - _ref_bf16(x, params))))
    assert jnp.allclose(out, _ref_f32(x, params), atol=3e-2), (
        jnp.max(jnp.abs(out - _ref_f32(x, params))))

    # --- larger ragged batch: multi-tile / batch-padded path (still small) ---
    x2 = jax.random.normal(k_x2, (300, input_size), jnp.float32)
    out2 = neural_network_forward(x2, padded_params, out_size=out_size,
                                  block_batch=128)
    out2 = jax.block_until_ready(out2)
    assert out2.shape == (300, output_size)
    assert jnp.allclose(out2, _ref_bf16(x2, params), atol=1e-4, rtol=1e-4), (
        jnp.max(jnp.abs(out2 - _ref_bf16(x2, params))))
    assert jnp.allclose(out2, _ref_f32(x2, params), atol=3e-2), (
        jnp.max(jnp.abs(out2 - _ref_f32(x2, params))))

    print("KERNEL_OK")
</pallas_src>

<mosaic_0001>
module attributes {stable_mosaic.version = 11 : i64} {
  func.func @mlp_kernel(%arg0: i32, %arg1: memref<8x9xf32, #tpu.memory_space<vmem>>, %arg2: memref<9x128xbf16, #tpu.memory_space<vmem>>, %arg3: memref<1x128xf32, #tpu.memory_space<vmem>>, %arg4: memref<128x128xbf16, #tpu.memory_space<vmem>>, %arg5: memref<1x128xf32, #tpu.memory_space<vmem>>, %arg6: memref<1x128xbf16, #tpu.memory_space<vmem>>, %arg7: memref<1x1xf32, #tpu.memory_space<vmem>>, %arg8: memref<1x8xf32, #tpu.memory_space<vmem>>) attributes {dimension_semantics = [#tpu.dimension_semantics<parallel>], iteration_bounds = array<i64: 1>, scalar_prefetch = 0 : i64, scratch_operands = 0 : i64, tpu.core_type = #tpu.core_type<tc>, window_params = [{transform_indices = @transform_0, window_bounds = array<i64: 8, 9>}, {pipeline_mode = #tpu.pipeline_mode<synchronous>, transform_indices = @transform_1, window_bounds = array<i64: 9, 128>}, {pipeline_mode = #tpu.pipeline_mode<synchronous>, transform_indices = @transform_2, window_bounds = array<i64: 1, 128>}, {pipeline_mode = #tpu.pipeline_mode<synchronous>, transform_indices = @transform_3, window_bounds = array<i64: 128, 128>}, {pipeline_mode = #tpu.pipeline_mode<synchronous>, transform_indices = @transform_4, window_bounds = array<i64: 1, 128>}, {pipeline_mode = #tpu.pipeline_mode<synchronous>, transform_indices = @transform_5, window_bounds = array<i64: 1, 128>}, {pipeline_mode = #tpu.pipeline_mode<synchronous>, transform_indices = @transform_6, window_bounds = array<i64: 1, 1>}, {transform_indices = @transform_7, window_bounds = array<i64: 1, 8>}]} {
    %c0 = arith.constant 0 : index
    %c0_0 = arith.constant 0 : index
    %0 = vector.load %arg1[%c0, %c0_0] : memref<8x9xf32, #tpu.memory_space<vmem>>, vector<8x9xf32>
    %1 = arith.truncf %0 : vector<8x9xf32> to vector<8x9xbf16>
    %c0_1 = arith.constant 0 : index
    %c0_2 = arith.constant 0 : index
    %2 = vector.load %arg2[%c0_1, %c0_2] : memref<9x128xbf16, #tpu.memory_space<vmem>>, vector<9x128xbf16>
    %cst = arith.constant dense<0.000000e+00> : vector<8x128xf32>
    %3 = tpu.matmul %1, %2, %cst {dimension_numbers = #tpu.dot_dimension_numbers<[1], [0], [0], [1], [0, 0, 1, 1], [], []>} : vector<8x9xbf16>, vector<9x128xbf16>, vector<8x128xf32> -> vector<8x128xf32>
    %c0_3 = arith.constant 0 : index
    %c0_4 = arith.constant 0 : index
    %4 = vector.load %arg3[%c0_3, %c0_4] : memref<1x128xf32, #tpu.memory_space<vmem>>, vector<1x128xf32>
    %5 = vector.broadcast %4 : vector<1x128xf32> to vector<8x128xf32>
    %6 = arith.addf %3, %5 : vector<8x128xf32>
    %cst_5 = arith.constant 0.000000e+00 : f32
    %7 = vector.broadcast %cst_5 : f32 to vector<8x128xf32>
    %8 = arith.maximumf %6, %7 : vector<8x128xf32>
    %9 = arith.truncf %8 : vector<8x128xf32> to vector<8x128xbf16>
    %c0_6 = arith.constant 0 : index
    %c0_7 = arith.constant 0 : index
    %10 = vector.load %arg4[%c0_6, %c0_7] : memref<128x128xbf16, #tpu.memory_space<vmem>>, vector<128x128xbf16>
    %cst_8 = arith.constant dense<0.000000e+00> : vector<8x128xf32>
    %11 = tpu.matmul %9, %10, %cst_8 {dimension_numbers = #tpu.dot_dimension_numbers<[1], [0], [0], [1], [0, 0, 1, 1], [], []>} : vector<8x128xbf16>, vector<128x128xbf16>, vector<8x128xf32> -> vector<8x128xf32>
    %c0_9 = arith.constant 0 : index
    %c0_10 = arith.constant 0 : index
    %12 = vector.load %arg5[%c0_9, %c0_10] : memref<1x128xf32, #tpu.memory_space<vmem>>, vector<1x128xf32>
    %13 = vector.broadcast %12 : vector<1x128xf32> to vector<8x128xf32>
    %14 = arith.addf %11, %13 : vector<8x128xf32>
    %cst_11 = arith.constant 0.000000e+00 : f32
    %15 = vector.broadcast %cst_11 : f32 to vector<8x128xf32>
    %16 = arith.maximumf %14, %15 : vector<8x128xf32>
    %c0_12 = arith.constant 0 : index
    %c0_13 = arith.constant 0 : index
    %17 = vector.load %arg6[%c0_12, %c0_13] : memref<1x128xbf16, #tpu.memory_space<vmem>>, vector<1x128xbf16>
    %18 = arith.truncf %16 : vector<8x128xf32> to vector<8x128xbf16>
    %cst_14 = arith.constant dense<0.000000e+00> : vector<1x8xf32>
    %19 = tpu.matmul %17, %18, %cst_14 {dimension_numbers = #tpu.dot_dimension_numbers<[1], [1], [0], [0], [0, 0, 1, 0], [], []>} : vector<1x128xbf16>, vector<8x128xbf16>, vector<1x8xf32> -> vector<1x8xf32>
    %c0_15 = arith.constant 0 : index
    %c0_16 = arith.constant 0 : index
    %20 = vector.load %arg7[%c0_15, %c0_16] : memref<1x1xf32, #tpu.memory_space<vmem>>, vector<1x1xf32>
    %21 = vector.broadcast %20 : vector<1x1xf32> to vector<1x8xf32>
    %22 = arith.addf %19, %21 : vector<1x8xf32>
    %23 = arith.negf %22 : vector<1x8xf32>
    %24 = math.exp %23 : vector<1x8xf32>
    %cst_17 = arith.constant 1.000000e+00 : f32
    %25 = vector.broadcast %cst_17 : f32 to vector<1x8xf32>
    %26 = arith.addf %25, %24 : vector<1x8xf32>
    %27 = arith.divf %25, %26 : vector<1x8xf32>
    %c0_18 = arith.constant 0 : index
    %c0_19 = arith.constant 0 : index
    %28 = vector.load %arg8[%c0_18, %c0_19] : memref<1x8xf32, #tpu.memory_space<vmem>>, vector<1x8xf32>
    tpu.vector_store %arg8[%c0_18, %c0_19], %27 {strides = array<i32>} : memref<1x8xf32, #tpu.memory_space<vmem>>, vector<1x8xf32>,
    return
  }
  func.func @transform_0(%arg0: i32) -> (i32, i32) {
    %c0_i32 = arith.constant 0 : i32
    %c0_i32_0 = arith.constant 0 : i32
    return %arg0, %c0_i32 : i32, i32
  }
  func.func @transform_1(%arg0: i32) -> (i32, i32) {
    %c0_i32 = arith.constant 0 : i32
    %c0_i32_0 = arith.constant 0 : i32
    %c0_i32_1 = arith.constant 0 : i32
    return %c0_i32, %c0_i32_0 : i32, i32
  }
  func.func @transform_2(%arg0: i32) -> (i32, i32) {
    %c0_i32 = arith.constant 0 : i32
    %c0_i32_0 = arith.constant 0 : i32
    %c0_i32_1 = arith.constant 0 : i32
    return %c0_i32, %c0_i32_0 : i32, i32
  }
  func.func @transform_3(%arg0: i32) -> (i32, i32) {
    %c0_i32 = arith.constant 0 : i32
    %c0_i32_0 = arith.constant 0 : i32
    %c0_i32_1 = arith.constant 0 : i32
    return %c0_i32, %c0_i32_0 : i32, i32
  }
  func.func @transform_4(%arg0: i32) -> (i32, i32) {
    %c0_i32 = arith.constant 0 : i32
    %c0_i32_0 = arith.constant 0 : i32
    %c0_i32_1 = arith.constant 0 : i32
    return %c0_i32, %c0_i32_0 : i32, i32
  }
  func.func @transform_5(%arg0: i32) -> (i32, i32) {
    %c0_i32 = arith.constant 0 : i32
    %c0_i32_0 = arith.constant 0 : i32
    %c0_i32_1 = arith.constant 0 : i32
    return %c0_i32, %c0_i32_0 : i32, i32
  }
  func.func @transform_6(%arg0: i32) -> (i32, i32) {
    %c0_i32 = arith.constant 0 : i32
    %c0_i32_0 = arith.constant 0 : i32
    %c0_i32_1 = arith.constant 0 : i32
    return %c0_i32, %c0_i32_0 : i32, i32
  }
  func.func @transform_7(%arg0: i32) -> (i32, i32) {
    %c0_i32 = arith.constant 0 : i32
    %c0_i32_0 = arith.constant 0 : i32
    return %c0_i32, %arg0 : i32, i32
  }
}

</mosaic_0001>

<llo_original>
// kernel: neural_network_forward.1
$region0: #{neural_network_forward.1}
  #allocation0 [shape = 'u32[]', space=smem, size = 0x4, offset = 0x4, fixed_abs, tag = 'smem constant byte address 0x4 - core index']
  #allocation1 [shape = 'u32[144,128]{1,0:T(1,128)}', space=vmem, size = 0x12000, scoped, tag = 'internal scratch']
  #allocation2 [shape = 'f32[1,1]{1,0:T(1,128)S(1)}', space=vmem, size = 0x200, scoped, tag = 'scoped memory for neural_network_forward.1']
  %s0 = inlined_call_operand.hbm [shape: f32[8,9], index: 0, kind: input, shape index: {}]
  %s1 = inlined_call_operand.hbm [shape: bf16[9,128], index: 1, kind: input, shape index: {}]
  %s2 = inlined_call_operand.vmem [shape: f32[1,128], index: 2, kind: input, shape index: {}]
  %s3 = inlined_call_operand.hbm [shape: bf16[128,128], index: 3, kind: input, shape index: {}]
  %s4 = inlined_call_operand.vmem [shape: f32[1,128], index: 4, kind: input, shape index: {}]
  %s5 = inlined_call_operand.vmem [shape: bf16[1,128], index: 5, kind: input, shape index: {}]
  %s6 = inlined_call_operand.<no memory space> [shape: f32[1,1], index: 6, kind: input, shape index: {}]
  %s7 = inlined_call_operand.hbm [shape: f32[1,8], index: 7, kind: output, shape index: {}]
  %s8 = sld [smem:[#allocation0]]
  $region50: #{neural_network_forward.1} parent=0
    _
  %s10 = ssub.s32 1, %s8
  %s11 = scalar_select 0, %s10, %s8
  %v12 = vstv %s6
  %13 = vst [vmem:[#allocation2] sm:$0x1] %v12
  $region1: #{neural_network_forward.1} parent=0
    #allocation3 [shape = 'u8[4096]{0}', space=vmem, size = 0x1000, scoped, tag = 'input window, operand 0, single buffered']
    #allocation4 [shape = 's32[1]{0}', space=sflag, size = 0x4, scoped, tag = 'scoped memory for neural_network_forward.1']
    #allocation5 [shape = 's32[1]{0}', space=sflag, size = 0x4, scoped, tag = 'scoped memory for neural_network_forward.1']
    #allocation6 [shape = 'u8[4096]{0}', space=vmem, size = 0x1000, scoped, tag = 'input window, operand 1, single buffered']
    #allocation7 [shape = 's32[1]{0}', space=sflag, size = 0x4, scoped, tag = 'scoped memory for neural_network_forward.1']
    #allocation8 [shape = 'u8[32768]{0}', space=vmem, size = 0x8000, scoped, tag = 'input window, operand 3, single buffered']
    #allocation9 [shape = 'u8[512]{0}', space=vmem, size = 0x400, scoped, tag = 'output window, operand 0, single buffered']
    %14 = vsyncpa [#allocation4], 0
    %15 = vsyncpa [#allocation7], 0
    %16 = vsyncpa [#allocation5], 0
    // Predicated region
    $region2: #{neural_network_forward.1} parent=1 // pred_check
      _
    $region3: #{neural_network_forward.1} parent=1 // pred_check_branch
      %18 = sbr.rel (0) target = $region5
    $region4: #{neural_network_forward.1} parent=1 // pred_region
      %s20 = ssub.s32 128, 128
      %21 = vsyncadd [#allocation4], %s20
      %s23 = sshll.u32 [#allocation3], 4
      %s24 = int_to_ptr.vmem [resolvable:$true] %s23
      %26 = dma.hbm_to_vmem [thread:$0]  %s0, 128, %s24, [#allocation4]
    $region5: #{neural_network_forward.1} parent=1 // pred_fallthru
      _
    // Predicated region
    $region6: #{neural_network_forward.1} parent=1 // pred_check
      _
    $region7: #{neural_network_forward.1} parent=1 // pred_check_branch
      %28 = sbr.rel (0) target = $region9
    $region8: #{neural_network_forward.1} parent=1 // pred_region
      %s30 = ssub.s32 128, 128
      %31 = vsyncadd [#allocation7], %s30
      %s32 = sshll.u32 [#allocation6], 4
      %s33 = int_to_ptr.vmem [resolvable:$true] %s32
      %38 = dma.hbm_to_vmem [thread:$0]  %s1, 128, %s33, [#allocation7], 64, 64, 4
    $region9: #{neural_network_forward.1} parent=1 // pred_fallthru
      _
    // Predicated region
    $region10: #{neural_network_forward.1} parent=1 // pred_check
      _
    $region11: #{neural_network_forward.1} parent=1 // pred_check_branch
      %40 = sbr.rel (0) target = $region13
    $region12: #{neural_network_forward.1} parent=1 // pred_region
      _
    $region13: #{neural_network_forward.1} parent=1 // pred_fallthru
      _
    // Predicated region
    $region14: #{neural_network_forward.1} parent=1 // pred_check
      _
    $region15: #{neural_network_forward.1} parent=1 // pred_check_branch
      %42 = sbr.rel (0) target = $region17
    $region16: #{neural_network_forward.1} parent=1 // pred_region
      %s44 = ssub.s32 1024, 1024
      %45 = vsyncadd [#allocation7], %s44
      %s46 = sshll.u32 [#allocation8], 4
      %s47 = int_to_ptr.vmem [resolvable:$true] %s46
      %52 = dma.hbm_to_vmem [thread:$0]  %s3, 1024, %s47, [#allocation7], 64, 64, 4
    $region17: #{neural_network_forward.1} parent=1 // pred_fallthru
      _
    // Predicated region
    $region18: #{neural_network_forward.1} parent=1 // pred_check
      _
    $region19: #{neural_network_forward.1} parent=1 // pred_check_branch
      %54 = sbr.rel (0) target = $region21
    $region20: #{neural_network_forward.1} parent=1 // pred_region
      _
    $region21: #{neural_network_forward.1} parent=1 // pred_fallthru
      _
    // Predicated region
    $region22: #{neural_network_forward.1} parent=1 // pred_check
      _
    $region23: #{neural_network_forward.1} parent=1 // pred_check_branch
      %56 = sbr.rel (0) target = $region25
    $region24: #{neural_network_forward.1} parent=1 // pred_region
      _
    $region25: #{neural_network_forward.1} parent=1 // pred_fallthru
      _
    // Predicated region
    $region26: #{neural_network_forward.1} parent=1 // pred_check
      _
    $region27: #{neural_network_forward.1} parent=1 // pred_check_branch
      %58 = sbr.rel (0) target = $region29
    $region28: #{neural_network_forward.1} parent=1 // pred_region
      _
    $region29: #{neural_network_forward.1} parent=1 // pred_fallthru
      _
    // Predicated region
    $region30: #{neural_network_forward.1} parent=1 // pred_check
      _
    $region31: #{neural_network_forward.1} parent=1 // pred_check_branch
      %60 = sbr.rel (0) target = $region33
    $region32: #{neural_network_forward.1} parent=1 // pred_region
      %61 = dma.done [#allocation4], 128
    $region33: #{neural_network_forward.1} parent=1 // pred_fallthru
      _
    // Predicated region
    $region34: #{neural_network_forward.1} parent=1 // pred_check
      _
    $region35: #{neural_network_forward.1} parent=1 // pred_check_branch
      %63 = sbr.rel (0) target = $region37
    $region36: #{neural_network_forward.1} parent=1 // pred_region
      %64 = dma.done [#allocation7], 128
    $region37: #{neural_network_forward.1} parent=1 // pred_fallthru
      _
    // Predicated region
    $region38: #{neural_network_forward.1} parent=1 // pred_check
      _
    $region39: #{neural_network_forward.1} parent=1 // pred_check_branch
      %66 = sbr.rel (0) target = $region41
    $region40: #{neural_network_forward.1} parent=1 // pred_region
      %67 = dma.done [#allocation7], 1024
    $region41: #{neural_network_forward.1} parent=1 // pred_fallthru
      _
    %v69 = vld [vmem:[#allocation3] sm:$0xff]
    %v70 = vpack.c.bf16 %v69, %v69
    %v71 = vld [vmem:[#allocation6] sm:$0xf]
    %v72 = vld [vmem:[#allocation6 + $0x4] sm:$0x1]
    %v73 = vld [vmem:[%s2] sm:$0x1]
    %v75 = vlaneseq
    %v76 = vshrl.u32 %v75, 7
    %v77 = vsub.s32 0, %v76
    %v78 = vrot.slane %v73, %v77
    %v82 = vunpack.c.l.b16 %v71
    %v83 = vunpack.c.l.b16 %v72
    %v84 = vpack.c.b16 %v83, %v82
    %vm85 = vcmask 72704
    %v87 = vsel %vm85, %v70, 0
    %vm89 = vcmask 1043456
    %vm90 = vcmask 1044480
    %v91 = vsel %vm89, 4294967295, 65535
    %v92 = vsel %vm90, %v91, 0
    %v94 = vand.u32 %v84, %v92
    %96 = vmatprep.subr.bf16.mxu0 0
    %97 = vmatpush1.bf16.msra.mxu0 %v94
    %98 = vmatprep.subr.bf16.mxu0 0
    %99 = vmatpush1.bf16.msra.mxu0 0
    %100 = vmatprep.subr.bf16.mxu0 0
    %101 = vmatpush1.bf16.msra.mxu0 0
    %102 = vmatprep.subr.bf16.mxu0 0
    %103 = vmatpush1.bf16.msra.mxu0 0
    %104 = vmatprep.subr.bf16.mxu0 0
    %105 = vmatpush1.bf16.msra.mxu0 0
    %106 = vmatprep.subr.bf16.mxu0 0
    %107 = vmatpush1.bf16.msra.mxu0 0
    %108 = vmatprep.subr.bf16.mxu0 0
    %109 = vmatpush1.bf16.msra.mxu0 0
    %110 = vmatprep.subr.bf16.mxu0 0
    %111 = vmatpush1.bf16.msra.mxu0 0
    %112 = vmatprep.subr.bf16.mxu0 0
    %113 = vmatpush1.bf16.msra.mxu0 0
    %114 = vmatprep.subr.bf16.mxu0 0
    %115 = vmatpush1.bf16.msra.mxu0 0
    %116 = vmatprep.subr.bf16.mxu0 0
    %117 = vmatpush1.bf16.msra.mxu0 0
    %118 = vmatprep.subr.bf16.mxu0 0
    %119 = vmatpush1.bf16.msra.mxu0 0
    %120 = vmatprep.subr.bf16.mxu0 0
    %121 = vmatpush1.bf16.msra.mxu0 0
    %122 = vmatprep.subr.bf16.mxu0 0
    %123 = vmatpush1.bf16.msra.mxu0 0
    %124 = vmatprep.subr.bf16.mxu0 0
    %125 = vmatpush1.bf16.msra.mxu0 0
    %126 = vmatprep.subr.bf16.mxu0 0
    %127 = vmatpush1.bf16.msra.mxu0 0
    %128 = vmatprep.mubr.bf16.mxu0 0
    %129 = vmatmul.mubr.bf16.gmra.mrb[0].mxu0 %v87
    %v130 = vpop.f32.mrb[0].mxu0
    %v131 = vadd.f32 %v78, %v130
    %v132 = vpop.f32.mrb[0].mxu0
    %v133 = vpop.f32.mrb[0].mxu0
    %v134 = vpop.f32.mrb[0].mxu0
    %135 = vdwg.mxu0
    %v136 = vmax.f32 %v131, 0.0
    %v137 = vpack.c.bf16 %v136, %v136
    %v138 = vld [vmem:[#allocation8] sm:$0xf]
    %v139 = vld [vmem:[#allocation8 + $0x4] sm:$0xf]
    %v140 = vld [vmem:[#allocation8 + $0x8] sm:$0xf]
    %v141 = vld [vmem:[#allocation8 + $0xc] sm:$0xf]
    %v142 = vld [vmem:[#allocation8 + $0x10] sm:$0xf]
    %v143 = vld [vmem:[#allocation8 + $0x14] sm:$0xf]
    %v144 = vld [vmem:[#allocation8 + $0x18] sm:$0xf]
    %v145 = vld [vmem:[#allocation8 + $0x1c] sm:$0xf]
    %v146 = vld [vmem:[#allocation8 + $0x20] sm:$0xf]
    %v147 = vld [vmem:[#allocation8 + $0x24] sm:$0xf]
    %v148 = vld [vmem:[#allocation8 + $0x28] sm:$0xf]
    %v149 = vld [vmem:[#allocation8 + $0x2c] sm:$0xf]
    %v150 = vld [vmem:[#allocation8 + $0x30] sm:$0xf]
    %v151 = vld [vmem:[#allocation8 + $0x34] sm:$0xf]
    %v152 = vld [vmem:[#allocation8 + $0x38] sm:$0xf]
    %v153 = vld [vmem:[#allocation8 + $0x3c] sm:$0xf]
    %v154 = vld [vmem:[%s4] sm:$0x1]
    %v156 = vlaneseq
    %v157 = vshrl.u32 %v156, 7
    %v158 = vsub.s32 0, %v157
    %v159 = vrot.slane %v154, %v158
    %v177 = vunpack.c.l.b16 %v138
    %v178 = vunpack.c.l.b16 %v139
    %v179 = vunpack.c.l.b16 %v140
    %v180 = vunpack.c.l.b16 %v141
    %v181 = vunpack.c.l.b16 %v142
    %v182 = vunpack.c.l.b16 %v143
    %v183 = vunpack.c.l.b16 %v144
    %v184 = vunpack.c.l.b16 %v145
    %v185 = vunpack.c.l.b16 %v146
    %v186 = vunpack.c.l.b16 %v147
    %v187 = vunpack.c.l.b16 %v148
    %v188 = vunpack.c.l.b16 %v149
    %v189 = vunpack.c.l.b16 %v150
    %v190 = vunpack.c.l.b16 %v151
    %v191 = vunpack.c.l.b16 %v152
    %v192 = vunpack.c.l.b16 %v153
    %v193 = vpack.c.b16 %v178, %v177
    %v194 = vpack.c.b16 %v180, %v179
    %v195 = vpack.c.b16 %v182, %v181
    %v196 = vpack.c.b16 %v184, %v183
    %v197 = vpack.c.b16 %v186, %v185
    %v198 = vpack.c.b16 %v188, %v187
    %v199 = vpack.c.b16 %v190, %v189
    %v200 = vpack.c.b16 %v192, %v191
    %209 = vmatprep.subr.bf16.mxu0 0
    %210 = vmatpush1.bf16.msra.mxu0 %v193
    %211 = vmatprep.subr.bf16.mxu0 0
    %212 = vmatpush1.bf16.msra.mxu0 %v194
    %213 = vmatprep.subr.bf16.mxu0 0
    %214 = vmatpush1.bf16.msra.mxu0 %v195
    %215 = vmatprep.subr.bf16.mxu0 0
    %216 = vmatpush1.bf16.msra.mxu0 %v196
    %217 = vmatprep.subr.bf16.mxu0 0
    %218 = vmatpush1.bf16.msra.mxu0 %v197
    %219 = vmatprep.subr.bf16.mxu0 0
    %220 = vmatpush1.bf16.msra.mxu0 %v198
    %221 = vmatprep.subr.bf16.mxu0 0
    %222 = vmatpush1.bf16.msra.mxu0 %v199
    %223 = vmatprep.subr.bf16.mxu0 0
    %224 = vmatpush1.bf16.msra.mxu0 %v200
    %225 = vmatprep.subr.bf16.mxu0 0
    %226 = vmatpush1.bf16.msra.mxu0 0
    %227 = vmatprep.subr.bf16.mxu0 0
    %228 = vmatpush1.bf16.msra.mxu0 0
    %229 = vmatprep.subr.bf16.mxu0 0
    %230 = vmatpush1.bf16.msra.mxu0 0
    %231 = vmatprep.subr.bf16.mxu0 0
    %232 = vmatpush1.bf16.msra.mxu0 0
    %233 = vmatprep.subr.bf16.mxu0 0
    %234 = vmatpush1.bf16.msra.mxu0 0
    %235 = vmatprep.subr.bf16.mxu0 0
    %236 = vmatpush1.bf16.msra.mxu0 0
    %237 = vmatprep.subr.bf16.mxu0 0
    %238 = vmatpush1.bf16.msra.mxu0 0
    %239 = vmatprep.subr.bf16.mxu0 0
    %240 = vmatpush1.bf16.msra.mxu0 0
    %241 = vmatprep.mubr.bf16.mxu0 0
    %242 = vmatmul.mubr.bf16.gmra.mrb[0].mxu0 %v137
    %v243 = vpop.f32.mrb[0].mxu0
    %v244 = vadd.f32 %v159, %v243
    %v245 = vpop.f32.mrb[0].mxu0
    %v246 = vpop.f32.mrb[0].mxu0
    %v247 = vpop.f32.mrb[0].mxu0
    %248 = vdwg.mxu0
    %v249 = vmax.f32 %v244, 0.0
    %v250 = vld [vmem:[%s5] sm:$0x1]
    %v251 = vpack.c.bf16 %v249, %v249
    %v252 = vld [vmem:[#allocation2] sm:$0x1]
    %254 = vset.pattern.permute.xlu0 0
    %255 = vperm.xlu0 %254, %v252
    %v256 = vpop.permute.xlu0 %255
    %v258 = vlaneseq
    %v259 = vshrl.u32 %v258, 7
    %v260 = vsub.s32 0, %v259
    %v261 = vrot.slane %v256, %v260
    %262 = vmatprep.subr.bf16.mxu0 0
    %263 = vmatpush1.bf16.xpose.msra.mxu0 %v251
    %264 = vmatprep.subr.bf16.mxu0 0
    %265 = vmatpush1.bf16.xpose.msra.mxu0 0
    %266 = vmatprep.subr.bf16.mxu0 0
    %267 = vmatpush1.bf16.xpose.msra.mxu0 0
    %268 = vmatprep.subr.bf16.mxu0 0
    %269 = vmatpush1.bf16.xpose.msra.mxu0 0
    %270 = vmatprep.subr.bf16.mxu0 0
    %271 = vmatpush1.bf16.xpose.msra.mxu0 0
    %272 = vmatprep.subr.bf16.mxu0 0
    %273 = vmatpush1.bf16.xpose.msra.mxu0 0
    %274 = vmatprep.subr.bf16.mxu0 0
    %275 = vmatpush1.bf16.xpose.msra.mxu0 0
    %276 = vmatprep.subr.bf16.mxu0 0
    %277 = vmatpush1.bf16.xpose.msra.mxu0 0
    %278 = vmatprep.subr.bf16.mxu0 0
    %279 = vmatpush1.bf16.xpose.msra.mxu0 0
    %280 = vmatprep.subr.bf16.mxu0 0
    %281 = vmatpush1.bf16.xpose.msra.mxu0 0
    %282 = vmatprep.subr.bf16.mxu0 0
    %283 = vmatpush1.bf16.xpose.msra.mxu0 0
    %284 = vmatprep.subr.bf16.mxu0 0
    %285 = vmatpush1.bf16.xpose.msra.mxu0 0
    %286 = vmatprep.subr.bf16.mxu0 0
    %287 = vmatpush1.bf16.xpose.msra.mxu0 0
    %288 = vmatprep.subr.bf16.mxu0 0
    %289 = vmatpush1.bf16.xpose.msra.mxu0 0
    %290 = vmatprep.subr.bf16.mxu0 0
    %291 = vmatpush1.bf16.xpose.msra.mxu0 0
    %292 = vmatprep.subr.bf16.mxu0 0
    %293 = vmatpush1.bf16.xpose.msra.mxu0 0
    %294 = vmatprep.mubr.bf16.mxu0 0
    %295 = vmatmul.mubr.bf16.gmra.mrb[0].mxu0 %v250
    %v296 = vpop.f32.mrb[0].mxu0
    %v297 = vadd.f32 %v261, %v296
    %v298 = vpop.f32.mrb[0].mxu0
    %v299 = vpop.f32.mrb[0].mxu0
    %v300 = vpop.f32.mrb[0].mxu0
    %301 = vdwg.mxu0
    %v302 = vxor.u32 %v297, 2147483648
    %v303 = vmul.f32 %v302, 1.442695
    %v304 = vpow.pop %v303
    %v305 = vadd.f32 %v304, 1.0
    %v306 = vrcp.pop %v305
    %v307 = vmul.f32 1.0, %v306
    %vm308 = vcmask 57344
    %309 = vst.msk [vmem:[#allocation9] sm:$0x1] %vm308, %v307
    // Predicated region
    $region42: #{neural_network_forward.1} parent=1 // pred_check
      _
    $region43: #{neural_network_forward.1} parent=1 // pred_check_branch
      %311 = sbr.rel (0) target = $region45
    $region44: #{neural_network_forward.1} parent=1 // pred_region
      %s313 = ssub.s32 16, 16
      %314 = vsyncadd [#allocation5], %s313
      %s316 = sshll.u32 [#allocation9], 4
      %s317 = int_to_ptr.vmem [resolvable:$true] %s316
      %319 = dma.vmem_to_hbm [thread:$0]  %s317, 16, %s7, [#allocation5]
    $region45: #{neural_network_forward.1} parent=1 // pred_fallthru
      _
    // Predicated region
    $region46: #{neural_network_forward.1} parent=1 // pred_check
      _
    $region47: #{neural_network_forward.1} parent=1 // pred_check_branch
      %321 = sbr.rel (0) target = $region49
    $region48: #{neural_network_forward.1} parent=1 // pred_region
      %322 = dma.done [#allocation5], 16
    $region49: #{neural_network_forward.1} parent=1 // pred_fallthru
      _
    %323 = vsyncpa [#allocation4], 1
    %324 = vsyncpa [#allocation7], 1
    %325 = vsyncpa [#allocation5], 1

</llo_original>
